<compile_context>
chip_gen: v5e
topology: v5e:2x2
jax: 0.10.0
libtpu: 0.0.40
codegen_flags: <defaults>
</compile_context>

<pallas_src>
import jax
import jax.numpy as jnp
from jax import lax
from jax.experimental import pallas as pl
from jax.experimental.pallas import tpu as pltpu

_EPS = 1e-12  # F.normalize default: x / max(||x||, eps)
_MiB = 1024 * 1024


def _codebook_kernel(flat_ref, embed_n_ref, dist_ref, ind_ref, *rest):
    """One (TN, D) token tile against the full (C, D) normalized codebook.

    flat_ref    : (TN, D) f32  raw token rows
    embed_n_ref : (C, D) bf16  l2-normalized codebook (hoisted, computed once)
    dist_ref    : (TN, C) f32  cosine similarities
    ind_ref     : (TN, 1) i32  first-occurrence argmax indices
    rest        : optionally ((TN, D) f32 ref,) for the l2-normalized token rows
    """
    x = flat_ref[...]
    en = embed_n_ref[...]

    # l2norm(x): x * rsqrt(max(||x||^2, eps^2)) == x / max(||x||, eps)  (EUP rsqrt)
    ssq = jnp.sum(x * x, axis=-1, keepdims=True)
    xn = x * lax.rsqrt(jnp.maximum(ssq, _EPS * _EPS))                   # (TN, D) f32

    # dist = xn @ embed_n^T on the MXU: bf16 inputs, f32 accumulation (native MXU rate).
    dist = lax.dot_general(xn.astype(jnp.bfloat16), en,
                           (((1,), (1,)), ((), ())),
                           preferred_element_type=jnp.float32)          # (TN, C) f32

    # First-occurrence argmax (matches torch.argmax tie-breaking), kept in the
    # lane-reduction's native (TN, 1) column layout: no one-hot pass, no M=1 matmul.
    C = dist.shape[-1]
    col = lax.broadcasted_iota(jnp.int32, dist.shape, 1)                # (TN, C)
    maxv = jnp.max(dist, axis=-1, keepdims=True)
    idx_col = jnp.min(jnp.where(dist == maxv, col, C),
                      axis=-1, keepdims=True)                           # (TN, 1) int32

    dist_ref[...] = dist
    ind_ref[...] = idx_col
    if rest:
        rest[0][...] = xn


def _vmem_capacity_bytes():
    try:
        info = pltpu.get_tpu_info()
        cap = getattr(info, "vmem_capacity_bytes", None)
        if cap:
            return int(cap)
    except Exception:
        pass
    return 64 * _MiB  # conservative (v7x-sized) fallback


def _vmem_budget():
    cap = _vmem_capacity_bytes()
    if cap >= 128 * _MiB:          # v5e / v6e: 128 MiB physical VMEM
        return 64 * _MiB, 96 * _MiB
    return 22 * _MiB, 40 * _MiB    # v7x: 64 MiB per TensorCore — leave headroom


def _pick_tile_n(C, D, emit_fnorm, budget):
    """Largest power-of-two token tile (>=256, MXU-aligned) whose working set fits budget."""
    def est(tn):
        # Double-buffered pipelined blocks (f32/i32): flat + dist + ind (+ fnorm).
        io = 2 * 4 * tn * (D + C + 1 + (D if emit_fnorm else 0))
        # Resident bf16 normalized codebook, double-buffered.
        codebook = 2 * 2 * C * D
        # In-kernel temporaries: col iota / compare / where (~3x i32 (TN,C)),
        # plus the xn f32 value and its bf16 copy.
        tmp = 3 * 4 * tn * C + 4 * tn * D + 2 * tn * D
        return io + codebook + tmp

    tn = 4096
    while tn > 256 and est(tn) > budget:
        tn //= 2
    return tn


def _codebook_pallas(flatten, embed_n_bf16, tn, emit_fnorm, vmem_limit):
    H, N, D = flatten.shape
    _, C, _ = embed_n_bf16.shape
    n_tiles = N // tn

    cost = pl.CostEstimate(
        flops=2 * H * N * C * D,                  # single bf16 similarity matmul
        transcendentals=H * N,                    # one rsqrt per token row
        bytes_accessed=(4 * H * N * D + 2 * H * C * D + 4 * H * N * C + 4 * H * N
                        + (4 * H * N * D if emit_fnorm else 0)),
    )

    out_shape = [
        jax.ShapeDtypeStruct((H, N, C), jnp.float32),   # dist
        jax.ShapeDtypeStruct((H, N, 1), jnp.int32),     # embed_ind (column layout)
    ]
    out_specs = [
        pl.BlockSpec((None, tn, C), lambda h, n: (h, n, 0)),
        pl.BlockSpec((None, tn, 1), lambda h, n: (h, n, 0)),
    ]
    if emit_fnorm:
        out_shape.append(jax.ShapeDtypeStruct((H, N, D), jnp.float32))
        out_specs.append(pl.BlockSpec((None, tn, D), lambda h, n: (h, n, 0)))

    return pl.pallas_call(
        _codebook_kernel,
        out_shape=tuple(out_shape),
        grid=(H, n_tiles),
        in_specs=[
            pl.BlockSpec((None, tn, D), lambda h, n: (h, n, 0)),   # token tile (f32)
            # Constant over the inner n axis (re-used per-h resident codebook); default
            # double-buffering kept for portability (single-buffering saves only 2*C*D bytes).
            pl.BlockSpec((None, C, D), lambda h, n: (h, 0, 0)),    # normalized embed (bf16)
        ],
        out_specs=tuple(out_specs),
        compiler_params=pltpu.CompilerParams(
            # Both axes parallel: v7x megacore shards the token axis even when H == 1.
            dimension_semantics=("parallel", "parallel"),
            vmem_limit_bytes=vmem_limit,
        ),
        cost_estimate=cost,
    )(flatten, embed_n_bf16)


def cosine_sim_codebook_forward(x, embed, *, return_flatten=True):
    """Eval-mode forward of CosineSimCodebook.

    x: (H, B, T, D) or (B, T, D); embed: (H, C, D).
    Returns (quantize, embed_ind, dist, embed, flatten) like the torch module
    (quantize is returned shaped like x; the spec's literal batched_embedding
    flattens it to (H*B*T, D), which is ill-shaped downstream for H*B*T > 1).
    Set return_flatten=False to skip emitting the normalized-flatten output stream.
    """
    needs_codebook_dim = x.ndim < 4
    x = x.astype(jnp.float32)
    if needs_codebook_dim:
        x = x[None]
    shape = x.shape                               # (H, B, T, D)
    H, D = shape[0], shape[-1]
    C = embed.shape[1]
    flatten = x.reshape(H, -1, D)                 # 'h ... d -> h (...) d'
    N = flatten.shape[1]

    # Hoisted codebook normalization (done once, not per token tile); bf16 for the MXU.
    embed_f32 = embed.astype(jnp.float32)
    e_ssq = jnp.sum(embed_f32 * embed_f32, axis=-1, keepdims=True)
    embed_n = (embed_f32 * lax.rsqrt(jnp.maximum(e_ssq, _EPS * _EPS))).astype(jnp.bfloat16)

    # Generation-aware token-axis tiling (pad N up to a multiple of the tile when needed).
    budget, vmem_limit = _vmem_budget()
    tn = _pick_tile_n(C, D, return_flatten, budget)
    if N <= tn:
        n_pad = ((N + 7) // 8) * 8                # single full-extent, sublane-aligned tile
        tn = n_pad
    else:
        n_pad = ((N + tn - 1) // tn) * tn
    flatten_in = jnp.pad(flatten, ((0, 0), (0, n_pad - N), (0, 0))) if n_pad != N else flatten

    outs = _codebook_pallas(flatten_in, embed_n, tn, return_flatten, vmem_limit)
    dist = outs[0][:, :N]                                     # (H, N, C) f32
    embed_ind_flat = outs[1][:, :N, 0]                        # (H, N) int32
    flatten_n = outs[2][:, :N] if return_flatten else None    # (H, N, D) f32 or None

    embed_ind = embed_ind_flat.reshape(shape[:-1])            # (H, B, T) int32

    # batched_embedding: exact row gather of the RAW (un-normalized) codebook in the
    # wrapper — replaces the slow f32 one_hot @ embed MXU matmul that was in the kernel.
    quant = jnp.take_along_axis(embed_f32, embed_ind_flat[:, :, None], axis=1)  # (H, N, D)
    quantize = quant.reshape(shape)                           # (H, B, T, D)

    if needs_codebook_dim:
        quantize = quantize[0]
        embed_ind = embed_ind[0]
    return quantize, embed_ind, dist, embed, flatten_n


def init_codebook(key, num_codebooks, codebook_size, dim):
    # uniform_init = kaiming_uniform_ on (H, C, D): fan_in = C * D, bound = sqrt(6/fan_in)
    fan_in = codebook_size * dim
    bound = (6.0 / fan_in) ** 0.5
    t = jax.random.uniform(key, (num_codebooks, codebook_size, dim),
                           minval=-bound, maxval=bound, dtype=jnp.float32)
    norm = jnp.sqrt(jnp.sum(t * t, axis=-1, keepdims=True))
    return t / jnp.maximum(norm, _EPS)            # l2norm(embed) at init


if __name__ == "__main__":
    H, B, T, D, C = 1, 2, 8, 32, 64               # num_codebooks, batch, tokens, dim, codebook_size
    key = jax.random.PRNGKey(0)
    k_embed, k_x = jax.random.split(key)

    embed = init_codebook(k_embed, H, C, D)       # (1, 64, 32)
    x = jax.random.normal(k_x, (B, T, D), dtype=jnp.float32)   # 3-D path (needs_codebook_dim)

    outs = jax.block_until_ready(cosine_sim_codebook_forward(x, embed))
    quantize, embed_ind, dist, embed_out, flatten_n = outs

    assert quantize.shape == (B, T, D)
    assert embed_ind.shape == (B, T)
    assert dist.shape == (H, B * T, C)
    assert flatten_n.shape == (H, B * T, D)
    assert embed_out.shape == (H, C, D)

    # Internal consistency: quantize rows are the selected raw codebook rows.
    sel = embed[0][embed_ind.reshape(-1)]
    assert jnp.allclose(quantize.reshape(-1, D), sel, atol=1e-6, rtol=1e-6)
    # Indices are the (first-occurrence) argmax of the returned dist.
    assert jnp.all(jnp.argmax(dist[0], axis=-1).astype(jnp.int32) == embed_ind.reshape(-1))
    # Normalized flatten rows are unit-norm.
    assert jnp.allclose(jnp.sum(flatten_n[0] * flatten_n[0], axis=-1), 1.0, atol=1e-4)

    # Multi-codebook 4-D path (H > 1) exercises squeezed-H blocks and the fnorm-less path.
    H2 = 2
    k_e2, k_x2 = jax.random.split(jax.random.PRNGKey(1))
    embed2 = init_codebook(k_e2, H2, C, D)
    x2 = jax.random.normal(k_x2, (H2, B, T, D), dtype=jnp.float32)
    q2, i2, d2, _, f2 = jax.block_until_ready(
        cosine_sim_codebook_forward(x2, embed2, return_flatten=False))
    assert q2.shape == (H2, B, T, D)
    assert i2.shape == (H2, B, T)
    assert d2.shape == (H2, B * T, C)
    assert f2 is None
    for h in range(H2):
        assert jnp.all(jnp.argmax(d2[h], axis=-1).astype(jnp.int32) == i2[h].reshape(-1))

    print("KERNEL_OK")
</pallas_src>

<mosaic_0001>
module attributes {stable_mosaic.version = 11 : i64} {
  func.func @_codebook_kernel(%arg0: i32, %arg1: i32, %arg2: memref<1x16x32xf32, #tpu.memory_space<vmem>>, %arg3: memref<1x64x32xbf16, #tpu.memory_space<vmem>>, %arg4: memref<1x16x64xf32, #tpu.memory_space<vmem>>, %arg5: memref<1x16x1xi32, #tpu.memory_space<vmem>>, %arg6: memref<1x16x32xf32, #tpu.memory_space<vmem>>) attributes {dimension_semantics = [#tpu.dimension_semantics<parallel>, #tpu.dimension_semantics<parallel>], iteration_bounds = array<i64: 1, 1>, scalar_prefetch = 0 : i64, scratch_operands = 0 : i64, tpu.core_type = #tpu.core_type<tc>, window_params = [{transform_indices = @transform_0, window_bounds = array<i64: 1, 16, 32>}, {transform_indices = @transform_1, window_bounds = array<i64: 1, 64, 32>}, {transform_indices = @transform_2, window_bounds = array<i64: 1, 16, 64>}, {transform_indices = @transform_3, window_bounds = array<i64: 1, 16, 1>}, {transform_indices = @transform_4, window_bounds = array<i64: 1, 16, 32>}]} {
    %c0 = arith.constant 0 : index
    %c0_0 = arith.constant 0 : index
    %c0_1 = arith.constant 0 : index
    %0 = vector.load %arg2[%c0, %c0_0, %c0_1] : memref<1x16x32xf32, #tpu.memory_space<vmem>>, vector<1x16x32xf32>
    %1 = vector.shape_cast %0 : vector<1x16x32xf32> to vector<16x32xf32>
    %c0_2 = arith.constant 0 : index
    %c0_3 = arith.constant 0 : index
    %c0_4 = arith.constant 0 : index
    %2 = vector.load %arg3[%c0_2, %c0_3, %c0_4] : memref<1x64x32xbf16, #tpu.memory_space<vmem>>, vector<1x64x32xbf16>
    %3 = vector.shape_cast %2 : vector<1x64x32xbf16> to vector<64x32xbf16>
    %4 = arith.mulf %1, %1 : vector<16x32xf32>
    %cst = arith.constant dense<0.000000e+00> : vector<16xf32>
    %5 = vector.multi_reduction <add>, %4, %cst [1] : vector<16x32xf32> to vector<16xf32>
    %6 = vector.shape_cast %5 : vector<16xf32> to vector<16x1xf32>
    %cst_5 = arith.constant 1.000000e-24 : f32
    %7 = vector.broadcast %cst_5 : f32 to vector<16x1xf32>
    %8 = arith.maximumf %6, %7 : vector<16x1xf32>
    %9 = math.rsqrt %8 : vector<16x1xf32>
    %10 = vector.broadcast %9 : vector<16x1xf32> to vector<16x32xf32>
    %11 = arith.mulf %1, %10 : vector<16x32xf32>
    %12 = arith.truncf %11 : vector<16x32xf32> to vector<16x32xbf16>
    %cst_6 = arith.constant dense<0.000000e+00> : vector<16x64xf32>
    %13 = tpu.matmul %12, %3, %cst_6 {dimension_numbers = #tpu.dot_dimension_numbers<[1], [1], [0], [0], [0, 0, 1, 0], [], []>} : vector<16x32xbf16>, vector<64x32xbf16>, vector<16x64xf32> -> vector<16x64xf32>
    %14 = tpu.iota {dimensions = array<i32: 1>} : vector<16x64xi32>
    %cst_7 = arith.constant dense<0xFF800000> : vector<16xf32>
    %15 = vector.multi_reduction <maximumf>, %13, %cst_7 [1] : vector<16x64xf32> to vector<16xf32>
    %16 = vector.shape_cast %15 : vector<16xf32> to vector<16x1xf32>
    %17 = vector.broadcast %16 : vector<16x1xf32> to vector<16x64xf32>
    %18 = arith.cmpf oeq, %13, %17 : vector<16x64xf32>
    %c64_i32 = arith.constant 64 : i32
    %19 = vector.broadcast %c64_i32 : i32 to vector<16x64xi32>
    %20 = arith.select %18, %14, %19 : vector<16x64xi1>, vector<16x64xi32>
    %cst_8 = arith.constant dense<2147483647> : vector<16xi32>
    %21 = vector.multi_reduction <minsi>, %20, %cst_8 [1] : vector<16x64xi32> to vector<16xi32>
    %22 = vector.shape_cast %21 : vector<16xi32> to vector<16x1xi32>
    %c0_9 = arith.constant 0 : index
    %c0_10 = arith.constant 0 : index
    %c0_11 = arith.constant 0 : index
    %23 = vector.load %arg4[%c0_9, %c0_10, %c0_11] : memref<1x16x64xf32, #tpu.memory_space<vmem>>, vector<1x16x64xf32>
    %24 = vector.shape_cast %23 : vector<1x16x64xf32> to vector<16x64xf32>
    %25 = vector.shape_cast %13 : vector<16x64xf32> to vector<1x16x64xf32>
    tpu.vector_store %arg4[%c0_9, %c0_10, %c0_11], %25 {strides = array<i32>} : memref<1x16x64xf32, #tpu.memory_space<vmem>>, vector<1x16x64xf32>,
    %c0_12 = arith.constant 0 : index
    %c0_13 = arith.constant 0 : index
    %c0_14 = arith.constant 0 : index
    %26 = vector.load %arg5[%c0_12, %c0_13, %c0_14] : memref<1x16x1xi32, #tpu.memory_space<vmem>>, vector<1x16x1xi32>
    %27 = vector.shape_cast %26 : vector<1x16x1xi32> to vector<16x1xi32>
    %28 = vector.shape_cast %22 : vector<16x1xi32> to vector<1x16x1xi32>
    tpu.vector_store %arg5[%c0_12, %c0_13, %c0_14], %28 {strides = array<i32>} : memref<1x16x1xi32, #tpu.memory_space<vmem>>, vector<1x16x1xi32>,
    %c0_15 = arith.constant 0 : index
    %c0_16 = arith.constant 0 : index
    %c0_17 = arith.constant 0 : index
    %29 = vector.load %arg6[%c0_15, %c0_16, %c0_17] : memref<1x16x32xf32, #tpu.memory_space<vmem>>, vector<1x16x32xf32>
    %30 = vector.shape_cast %29 : vector<1x16x32xf32> to vector<16x32xf32>
    %31 = vector.shape_cast %11 : vector<16x32xf32> to vector<1x16x32xf32>
    tpu.vector_store %arg6[%c0_15, %c0_16, %c0_17], %31 {strides = array<i32>} : memref<1x16x32xf32, #tpu.memory_space<vmem>>, vector<1x16x32xf32>,
    return
  }
  func.func @transform_0(%arg0: i32, %arg1: i32) -> (i32, i32, i32) {
    %c0_i32 = arith.constant 0 : i32
    %c0_i32_0 = arith.constant 0 : i32
    return %arg0, %arg1, %c0_i32 : i32, i32, i32
  }
  func.func @transform_1(%arg0: i32, %arg1: i32) -> (i32, i32, i32) {
    %c0_i32 = arith.constant 0 : i32
    %c0_i32_0 = arith.constant 0 : i32
    %c0_i32_1 = arith.constant 0 : i32
    return %arg0, %c0_i32, %c0_i32_0 : i32, i32, i32
  }
  func.func @transform_2(%arg0: i32, %arg1: i32) -> (i32, i32, i32) {
    %c0_i32 = arith.constant 0 : i32
    %c0_i32_0 = arith.constant 0 : i32
    return %arg0, %arg1, %c0_i32 : i32, i32, i32
  }
  func.func @transform_3(%arg0: i32, %arg1: i32) -> (i32, i32, i32) {
    %c0_i32 = arith.constant 0 : i32
    %c0_i32_0 = arith.constant 0 : i32
    return %arg0, %arg1, %c0_i32 : i32, i32, i32
  }
  func.func @transform_4(%arg0: i32, %arg1: i32) -> (i32, i32, i32) {
    %c0_i32 = arith.constant 0 : i32
    %c0_i32_0 = arith.constant 0 : i32
    return %arg0, %arg1, %c0_i32 : i32, i32, i32
  }
}

</mosaic_0001>

<llo_original>
// kernel: tpu_custom_call.1
$region0: #{tpu_custom_call.1}
  #allocation0 [shape = 'u32[]', space=smem, size = 0x4, offset = 0x4, fixed_abs, tag = 'smem constant byte address 0x4 - core index']
  #allocation1 [shape = 'u32[72,128]{1,0:T(1,128)}', space=vmem, size = 0x9000, scoped, tag = 'internal scratch']
  %s0 = inlined_call_operand.vmem [shape: f32[1,16,32], index: 0, kind: input, shape index: {}]
  %s1 = inlined_call_operand.vmem [shape: bf16[1,64,32], index: 1, kind: input, shape index: {}]
  %s2 = inlined_call_operand.hbm [shape: f32[1,16,64], index: 2, kind: output, shape index: {0}]
  %s3 = inlined_call_operand.vmem [shape: s32[1,16,1], index: 3, kind: output, shape index: {1}]
  %s4 = inlined_call_operand.hbm [shape: f32[1,16,32], index: 4, kind: output, shape index: {2}]
  %5 = xla_tuple %s2, %s3, %s4
  %s6 = sld [smem:[#allocation0]]
  $region34: #{tpu_custom_call.1} parent=0
    _
  %s8 = ssub.s32 1, %s6
  %s9 = scalar_select 0, %s8, %s6
  $region1: #{tpu_custom_call.1} parent=0
    #allocation2 [shape = 'u8[8192]{0}', space=vmem, size = 0x2000, scoped, tag = 'output window, operand 0, single buffered']
    #allocation3 [shape = 's32[1]{0}', space=sflag, size = 0x4, scoped, tag = 'scoped memory for tpu_custom_call.1']
    #allocation4 [shape = 'u8[8192]{0}', space=vmem, size = 0x2000, scoped, tag = 'output window, operand 2, single buffered']
    #allocation5 [shape = 's32[1]{0}', space=sflag, size = 0x4, scoped, tag = 'scoped memory for tpu_custom_call.1']
    %10 = vsyncpa [#allocation3], 0
    %11 = vsyncpa [#allocation5], 0
    // Predicated region
    $region2: #{tpu_custom_call.1} parent=1 // pred_check
      _
    $region3: #{tpu_custom_call.1} parent=1 // pred_check_branch
      %13 = sbr.rel (0) target = $region5
    $region4: #{tpu_custom_call.1} parent=1 // pred_region
      _
    $region5: #{tpu_custom_call.1} parent=1 // pred_fallthru
      _
    // Predicated region
    $region6: #{tpu_custom_call.1} parent=1 // pred_check
      _
    $region7: #{tpu_custom_call.1} parent=1 // pred_check_branch
      %15 = sbr.rel (0) target = $region9
    $region8: #{tpu_custom_call.1} parent=1 // pred_region
      _
    $region9: #{tpu_custom_call.1} parent=1 // pred_fallthru
      _
    %v17 = vld [vmem:[%s0] sm:$0xff]
    %v18 = vld [vmem:[%s0 + $0x8] sm:$0xff]
    %v19 = vld [vmem:[%s1] sm:$0xf]
    %v20 = vld [vmem:[%s1 + $0x4] sm:$0xf]
    %v21 = vld [vmem:[%s1 + $0x8] sm:$0xf]
    %v22 = vld [vmem:[%s1 + $0xc] sm:$0xf]
    %v23 = vld [vmem:[%s1 + $0x10] sm:$0xf]
    %v24 = vld [vmem:[%s1 + $0x14] sm:$0xf]
    %v25 = vld [vmem:[%s1 + $0x18] sm:$0xf]
    %v26 = vld [vmem:[%s1 + $0x1c] sm:$0xf]
    %v27 = vmul.f32 %v17, %v17
    %v28 = vmul.f32 %v18, %v18
    %vm29 = vcmask 261120
    %v30 = vsel %vm29, %v27, 0.0
    %31 = vadd.xlane.f32.xlu0 %v30
    %v32 = vpop.xlane.xlu0 %31
    %v33 = vsel %vm29, %v28, 0.0
    %34 = vadd.xlane.f32.xlu0 %v33
    %v35 = vpop.xlane.xlu0 %34
    %v36 = vmax.f32 %v32, 1e-24
    %v37 = vmax.f32 %v35, 1e-24
    %v38 = vrsqrt.pop %v36
    %v39 = vmul.f32 %v38, %v36
    %v40 = vmul.f32 %v39, %v38
    %v41 = vmul.f32 0.5, %v40
    %v42 = vsub.f32 1.5, %v41
    %v43 = vmul.f32 %v38, %v42
    %vm44 = vweird.f32 %v36
    %vm45 = vweird.f32 %v38
    %vm46 = vmor %vm44, %vm45
    %v47 = vsel %vm46, %v38, %v43
    %v48 = vrsqrt.pop %v37
    %v49 = vmul.f32 %v48, %v37
    %v50 = vmul.f32 %v49, %v48
    %v51 = vmul.f32 0.5, %v50
    %v52 = vsub.f32 1.5, %v51
    %v53 = vmul.f32 %v48, %v52
    %vm54 = vweird.f32 %v37
    %vm55 = vweird.f32 %v48
    %vm56 = vmor %vm54, %vm55
    %v57 = vsel %vm56, %v48, %v53
    %v58 = vmul.f32 %v17, %v47
    %v59 = vmul.f32 %v18, %v57
    %v60 = vpack.c.bf16 %v59, %v58
    %v69 = vunpack.c.l.b16 %v19
    %v70 = vunpack.c.l.b16 %v20
    %v71 = vunpack.c.l.b16 %v21
    %v72 = vunpack.c.l.b16 %v22
    %v73 = vunpack.c.l.b16 %v23
    %v74 = vunpack.c.l.b16 %v24
    %v75 = vunpack.c.l.b16 %v25
    %v76 = vunpack.c.l.b16 %v26
    %v77 = vpack.c.b16 %v70, %v69
    %v78 = vpack.c.b16 %v72, %v71
    %v79 = vpack.c.b16 %v74, %v73
    %v80 = vpack.c.b16 %v76, %v75
    %v82 = vsel %vm29, %v60, 0
    %v85 = vsel %vm29, %v77, 0
    %v88 = vsel %vm29, %v78, 0
    %v91 = vsel %vm29, %v79, 0
    %v94 = vsel %vm29, %v80, 0
    %96 = vmatpush.bf16.xpose.msra.mxu0 0
    %97 = vmatpush.bf16.xpose.msra.mxu0 0
    %98 = vmatpush.bf16.xpose.msra.mxu0 0
    %99 = vmatpush.bf16.xpose.msra.mxu0 0
    %100 = vmatpush.bf16.xpose.msra.mxu0 %v94
    %101 = vmatpush.bf16.xpose.msra.mxu0 %v91
    %102 = vmatpush.bf16.xpose.msra.mxu0 %v88
    %103 = vmatpush.bf16.xpose.msra.mxu0 %v85
    %104 = vmatmul.bf16.gmra.mxu0 %v82
    %v105 = vpop.f32.mrf.mxu0
    %v106 = vadd.f32 0.0, %v105
    %v107 = vpop.f32.mrf.mxu0
    %v108 = vadd.f32 0.0, %v107
    %109 = vdwg.mxu0
    %v110 = vlaneseq
    %v111 = vand.u32 %v110, 127
    %vm112 = vcmask 523264
    %v113 = vsel %vm112, %v106, -inf
    %114 = vmax.xlane.f32.xlu0 %v113
    %v115 = vpop.xlane.xlu0 %114
    %v116 = vsel %vm112, %v108, -inf
    %117 = vmax.xlane.f32.xlu0 %v116
    %v118 = vpop.xlane.xlu0 %117
    %vm119 = vcmp.eq.f32.partialorder %v106, %v115
    %vm120 = vcmp.eq.f32.partialorder %v108, %v118
    %v121 = vsel %vm119, %v111, 64
    %v122 = vsel %vm120, %v111, 64
    %v123 = vsel %vm112, %v121, 2147483647
    %v124 = vand.u32 %v123, 65535
    %v125 = vshra.s32 %v123, 16
    %v126 = vcvt.s32.f32 %v124
    %v127 = vcvt.s32.f32 %v125
    %128 = vmin.xlane.f32.xlu0 %v127
    %v129 = vpop.xlane.xlu0 %128
    %vm130 = vcmp.eq.f32.partialorder %v127, %v129
    %v131 = vsel %vm130, %v126, inf
    %132 = vmin.xlane.f32.xlu0 %v131
    %v133 = vpop.xlane.xlu0 %132
    %v134 = vcvt.f32.s32 %v133
    %v135 = vcvt.f32.s32 %v129
    %v136 = vshll.u32 %v135, 16
    %v137 = vadd.s32 %v136, %v134
    %v138 = vsel %vm112, %v122, 2147483647
    %v139 = vand.u32 %v138, 65535
    %v140 = vshra.s32 %v138, 16
    %v141 = vcvt.s32.f32 %v139
    %v142 = vcvt.s32.f32 %v140
    %143 = vmin.xlane.f32.xlu0 %v142
    %v144 = vpop.xlane.xlu0 %143
    %vm145 = vcmp.eq.f32.partialorder %v142, %v144
    %v146 = vsel %vm145, %v141, inf
    %147 = vmin.xlane.f32.xlu0 %v146
    %v148 = vpop.xlane.xlu0 %147
    %v149 = vcvt.f32.s32 %v148
    %v150 = vcvt.f32.s32 %v144
    %v151 = vshll.u32 %v150, 16
    %v152 = vadd.s32 %v151, %v149
    %153 = vst.msk [vmem:[#allocation2] sm:$0xff] %vm112, %v106
    %154 = vst.msk [vmem:[#allocation2 + $0x8] sm:$0xff] %vm112, %v108
    %vm155 = vcmask 7168
    %156 = vst.msk [vmem:[%s3] sm:$0xff] %vm155, %v137
    %157 = vst.msk [vmem:[%s3 + $0x8] sm:$0xff] %vm155, %v152
    %158 = vst.msk [vmem:[#allocation4] sm:$0xff] %vm29, %v58
    %159 = vst.msk [vmem:[#allocation4 + $0x8] sm:$0xff] %vm29, %v59
    // Predicated region
    $region10: #{tpu_custom_call.1} parent=1 // pred_check
      _
    $region11: #{tpu_custom_call.1} parent=1 // pred_check_branch
      %161 = sbr.rel (0) target = $region13
    $region12: #{tpu_custom_call.1} parent=1 // pred_region
      %163 = vsyncadd [#allocation3], 0
      %s164 = sshll.u32 [#allocation2], 4
      %s165 = int_to_ptr.vmem [resolvable:$true] %s164
      %s166 = sshll.u32 %s2, 4
      %s167 = int_to_ptr.hbm [resolvable:$true] %s166
      %172 = dma.vmem_to_hbm [thread:$0]  %s165, 256, %s167, [#allocation3], 128, 128, 8
    $region13: #{tpu_custom_call.1} parent=1 // pred_fallthru
      _
    // Predicated region
    $region14: #{tpu_custom_call.1} parent=1 // pred_check
      _
    $region15: #{tpu_custom_call.1} parent=1 // pred_check_branch
      %174 = sbr.rel (0) target = $region17
    $region16: #{tpu_custom_call.1} parent=1 // pred_region
      _
    $region17: #{tpu_custom_call.1} parent=1 // pred_fallthru
      _
    // Predicated region
    $region18: #{tpu_custom_call.1} parent=1 // pred_check
      _
    $region19: #{tpu_custom_call.1} parent=1 // pred_check_branch
      %176 = sbr.rel (0) target = $region21
    $region20: #{tpu_custom_call.1} parent=1 // pred_region
      %178 = vsyncadd [#allocation5], 0
      %s179 = sshll.u32 [#allocation4], 4
      %s180 = int_to_ptr.vmem [resolvable:$true] %s179
      %s181 = sshll.u32 %s4, 4
      %s182 = int_to_ptr.hbm [resolvable:$true] %s181
      %187 = dma.vmem_to_hbm [thread:$0]  %s180, 256, %s182, [#allocation5], 128, 128, 8
    $region21: #{tpu_custom_call.1} parent=1 // pred_fallthru
      _
    // Predicated region
    $region22: #{tpu_custom_call.1} parent=1 // pred_check
      _
    $region23: #{tpu_custom_call.1} parent=1 // pred_check_branch
      %189 = sbr.rel (0) target = $region25
    $region24: #{tpu_custom_call.1} parent=1 // pred_region
      %191 = dma.done [#allocation3], 256
    $region25: #{tpu_custom_call.1} parent=1 // pred_fallthru
      _
    // Predicated region
    $region26: #{tpu_custom_call.1} parent=1 // pred_check
      _
    $region27: #{tpu_custom_call.1} parent=1 // pred_check_branch
      %193 = sbr.rel (0) target = $region29
    $region28: #{tpu_custom_call.1} parent=1 // pred_region
      _
    $region29: #{tpu_custom_call.1} parent=1 // pred_fallthru
      _
    // Predicated region
    $region30: #{tpu_custom_call.1} parent=1 // pred_check
      _
    $region31: #{tpu_custom_call.1} parent=1 // pred_check_branch
      %195 = sbr.rel (0) target = $region33
    $region32: #{tpu_custom_call.1} parent=1 // pred_region
      %197 = dma.done [#allocation5], 256
    $region33: #{tpu_custom_call.1} parent=1 // pred_fallthru
      _
    %198 = vsyncpa [#allocation3], 1
    %199 = vsyncpa [#allocation5], 1

</llo_original>
